<compile_context>
chip_gen: v6e
topology: v6e:2x2x1
jax: 0.10.0
libtpu: 0.0.40
codegen_flags: <defaults>
</compile_context>

<pallas_src>
import functools

import jax
import jax.numpy as jnp
from jax.experimental import pallas as pl
from jax.experimental.pallas import tpu as pltpu

N_EMBD = 32
BLOCK_SIZE = 256  # max context supported by the module's tril buffer


def _pick_batch_block(B, max_bb=32):
    """Largest divisor of B that is <= max_bb while keeping >= 2 grid steps
    (so v7x's two TensorCores can both be used via the 'parallel' grid axis).
    Per-step VMEM stays well under the 16 MiB (v5e) default scoped limit even
    at Bb=32 (dominant transient is the (Bb, 128, T<=256) f32 score chunk)."""
    divisors = [d for d in range(1, min(B, max_bb) + 1) if B % d == 0]
    multi_step = [d for d in divisors if B // d >= 2]
    return max(multi_step) if multi_step else max(divisors)


def _head_kernel(x_ref, wqkv_ref, mask_ref, o_ref, *, head_size, seq_len, q_chunk):
    # x_ref:    (Bb*T, C)  activations (f32 or bf16)
    # wqkv_ref: (C, 3H)    fused [Wq*scale | Wk | Wv], bf16
    # mask_ref: (T, T)     additive causal mask (0 / -1e30), bf16
    # o_ref:    (Bb, H, T) lane-dense output layout (wrapper swaps back to (B, T, H))
    BbT, C = x_ref.shape
    T = seq_len
    Bb = BbT // T
    H = head_size

    # Fused QKV projection on the flattened (Bb*T, C) slab — one bf16 MXU matmul,
    # f32 accumulation.
    x_bf = x_ref[...].astype(jnp.bfloat16)
    qkv = jnp.dot(x_bf, wqkv_ref[...], preferred_element_type=jnp.float32)  # (Bb*T, 3H)
    qkv = qkv.reshape(Bb, T, 3 * H)

    # Softmax scale already folded into Wq wrapper-side.
    q = qkv[:, :, 0 * H:1 * H].astype(jnp.bfloat16)
    k = qkv[:, :, 1 * H:2 * H].astype(jnp.bfloat16)
    v = qkv[:, :, 2 * H:3 * H].astype(jnp.bfloat16)

    # Causal query tiling: chunk ci only needs keys [0, (ci+1)*q_chunk) — every key at
    # or beyond the chunk end is masked for every query row in the chunk.
    n_chunks = T // q_chunk
    for ci in range(n_chunks):  # static unroll (n_chunks <= 2 for T <= 256)
        q0 = ci * q_chunk
        kend = q0 + q_chunk

        qc = q[:, q0:q0 + q_chunk, :]      # (Bb, tq, H)   bf16
        kc = k[:, :kend, :]                # (Bb, kend, H) bf16
        vc = v[:, :kend, :]                # (Bb, kend, H) bf16

        # Scores: contract head dims directly (no explicit k transpose), f32 acc.
        s = jnp.einsum('btd,bsd->bts', qc, kc,
                       preferred_element_type=jnp.float32)          # (Bb, tq, kend)

        # Additive causal mask (bf16 resident; add upcasts to f32).
        m = mask_ref[q0:q0 + q_chunk, :kend]
        s = s + m[None, :, :].astype(jnp.float32)

        # Numerically-stable softmax in f32; denominator reciprocal runs in the
        # (otherwise idle) EUP slot.
        s = jnp.exp(s - jnp.max(s, axis=-1, keepdims=True))
        p = s * pl.reciprocal(jnp.sum(s, axis=-1, keepdims=True), approx=True)

        # Dropout == identity in eval mode.
        # PV emitted directly as (Bb, H, tq): lane-dense stores along T.
        oc = jnp.einsum('bsh,bts->bht', vc, p.astype(jnp.bfloat16),
                        preferred_element_type=jnp.float32)          # (Bb, H, tq)
        o_ref[:, :, q0:q0 + q_chunk] = oc.astype(o_ref.dtype)


def head_forward(x, wq, wk, wv, *, batch_block=None):
    """x: (B, T, C); wq/wk/wv: (C, H) pre-transposed nn.Linear weights (no bias)."""
    B, T, C = x.shape
    H = wq.shape[1]
    assert C == N_EMBD and T <= BLOCK_SIZE
    assert T % 8 == 0, "T must be a multiple of 8 (TPU sublane tiling)"

    Bb = batch_block if batch_block is not None else _pick_batch_block(B)
    assert B % Bb == 0

    # Query-chunk size for causal tiling: 128-row chunks when T allows, else the
    # whole sequence (e.g. the T=8 demo).
    q_chunk = 128 if (T % 128 == 0 and T > 128) else T

    # Fold the softmax scale into Wq, fuse the three projections into one lane-denser
    # (C, 3H) operand, and cast to bf16 once (constant weight, wrapper-side is free).
    scale = H ** -0.5
    wqkv = jnp.concatenate([wq * scale, wk, wv], axis=1).astype(jnp.bfloat16)

    # Additive causal mask, built once wrapper-side; bf16 halves its VMEM/DMA cost.
    # Large finite negative (not -inf) so a masked entry can never produce NaN.
    row = jnp.arange(T, dtype=jnp.int32)[:, None]
    col = jnp.arange(T, dtype=jnp.int32)[None, :]
    mask = jnp.where(col <= row, 0.0, -1e30).astype(jnp.bfloat16)

    # Present x as a 2-D (B*T, C) slab so no activation reshape happens in-kernel.
    x2d = x.reshape(B * T, C)

    kernel = functools.partial(_head_kernel, head_size=H, seq_len=T, q_chunk=q_chunk)

    out_bht = pl.pallas_call(
        kernel,
        out_shape=jax.ShapeDtypeStruct((B, H, T), x.dtype),
        grid_spec=pltpu.PrefetchScalarGridSpec(
            num_scalar_prefetch=0,
            grid=(B // Bb,),
            in_specs=[
                pl.BlockSpec((Bb * T, C), lambda b: (b, 0)),
                pl.BlockSpec((C, 3 * H), lambda b: (0, 0)),
                pl.BlockSpec((T, T), lambda b: (0, 0)),
            ],
            out_specs=pl.BlockSpec((Bb, H, T), lambda b: (b, 0, 0)),
        ),
        compiler_params=pltpu.CompilerParams(
            dimension_semantics=("parallel",)),
    )(x2d, wqkv, mask)

    # Lane-dense (B, H, T) kernel output -> module's (B, T, H) layout.
    return jnp.swapaxes(out_bht, 1, 2)


def head_reference(x, wq, wk, wv):
    """Pure-JAX f32 reference of the PyTorch forward (eval mode), full precision."""
    hp = jax.lax.Precision.HIGHEST
    q = jnp.einsum('btc,ch->bth', x, wq, precision=hp)
    k = jnp.einsum('btc,ch->bth', x, wk, precision=hp)
    v = jnp.einsum('btc,ch->bth', x, wv, precision=hp)
    wei = jnp.einsum('btd,bsd->bts', q, k, precision=hp) * (k.shape[-1] ** -0.5)
    T = x.shape[1]
    tril = jnp.tril(jnp.ones((T, T), dtype=jnp.float32))
    wei = jnp.where(tril == 0, -jnp.inf, wei)
    wei = jax.nn.softmax(wei, axis=-1)
    return jnp.einsum('bts,bsh->bth', wei, v, precision=hp)


def _run_case(key, B, T, C, head_size):
    kx, kq, kk, kv = jax.random.split(key, 4)
    x = jax.random.normal(kx, (B, T, C), dtype=jnp.float32)
    bound = 1.0 / (C ** 0.5)
    wq = jax.random.uniform(kq, (C, head_size), jnp.float32, -bound, bound)
    wk = jax.random.uniform(kk, (C, head_size), jnp.float32, -bound, bound)
    wv = jax.random.uniform(kv, (C, head_size), jnp.float32, -bound, bound)

    out = jax.block_until_ready(head_forward(x, wq, wk, wv))
    ref = head_reference(x, wq, wk, wv)
    assert out.shape == (B, T, head_size)
    # Kernel uses bf16 MXU operands (f32 accumulation) + EUP approx reciprocal, so it
    # is validated against the full-f32 reference with bf16-appropriate tolerances.
    err = float(jnp.max(jnp.abs(out - ref)))
    assert jnp.allclose(out, ref, atol=3e-2, rtol=3e-2), (
        f"mismatch vs reference (B={B}, T={T}): max abs err {err}")


if __name__ == "__main__":
    head_size = 16
    key = jax.random.PRNGKey(0)
    k_small, k_big = jax.random.split(key)

    # Small demo shape (matches the module: n_embd=32).
    _run_case(k_small, B=2, T=8, C=N_EMBD, head_size=head_size)
    # Full-context case: exercises causal query tiling (2 chunks of 128), batch
    # blocking (Bb=2, 2 parallel grid steps) and the lane-dense (B, H, 256) stores.
    _run_case(k_big, B=4, T=BLOCK_SIZE, C=N_EMBD, head_size=head_size)

    print("KERNEL_OK")
</pallas_src>

<mosaic_0001>
module attributes {stable_mosaic.version = 11 : i64} {
  func.func @_head_kernel(%arg0: i32, %arg1: memref<8x32xf32, #tpu.memory_space<vmem>>, %arg2: memref<32x48xbf16, #tpu.memory_space<vmem>>, %arg3: memref<8x8xbf16, #tpu.memory_space<vmem>>, %arg4: memref<1x16x8xf32, #tpu.memory_space<vmem>>) attributes {dimension_semantics = [#tpu.dimension_semantics<parallel>], iteration_bounds = array<i64: 2>, scalar_prefetch = 0 : i64, scratch_operands = 0 : i64, tpu.core_type = #tpu.core_type<tc>, window_params = [{transform_indices = @transform_0, window_bounds = array<i64: 8, 32>}, {pipeline_mode = #tpu.pipeline_mode<synchronous>, transform_indices = @transform_1, window_bounds = array<i64: 32, 48>}, {pipeline_mode = #tpu.pipeline_mode<synchronous>, transform_indices = @transform_2, window_bounds = array<i64: 8, 8>}, {transform_indices = @transform_3, window_bounds = array<i64: 1, 16, 8>}]} {
    %c0 = arith.constant 0 : index
    %c0_0 = arith.constant 0 : index
    %0 = vector.load %arg1[%c0, %c0_0] : memref<8x32xf32, #tpu.memory_space<vmem>>, vector<8x32xf32>
    %1 = arith.truncf %0 : vector<8x32xf32> to vector<8x32xbf16>
    %c0_1 = arith.constant 0 : index
    %c0_2 = arith.constant 0 : index
    %2 = vector.load %arg2[%c0_1, %c0_2] : memref<32x48xbf16, #tpu.memory_space<vmem>>, vector<32x48xbf16>
    %cst = arith.constant dense<0.000000e+00> : vector<8x48xf32>
    %3 = tpu.matmul %1, %2, %cst {dimension_numbers = #tpu.dot_dimension_numbers<[1], [0], [0], [1], [0, 0, 1, 1], [], []>} : vector<8x32xbf16>, vector<32x48xbf16>, vector<8x48xf32> -> vector<8x48xf32>
    %4 = vector.shape_cast %3 : vector<8x48xf32> to vector<1x8x48xf32>
    %5 = vector.extract_strided_slice %4 {offsets = [0, 0, 0], sizes = [1, 8, 16], strides = [1, 1, 1]} : vector<1x8x48xf32> to vector<1x8x16xf32>
    %6 = arith.truncf %5 : vector<1x8x16xf32> to vector<1x8x16xbf16>
    %7 = vector.extract_strided_slice %4 {offsets = [0, 0, 16], sizes = [1, 8, 16], strides = [1, 1, 1]} : vector<1x8x48xf32> to vector<1x8x16xf32>
    %8 = arith.truncf %7 : vector<1x8x16xf32> to vector<1x8x16xbf16>
    %9 = vector.extract_strided_slice %4 {offsets = [0, 0, 32], sizes = [1, 8, 16], strides = [1, 1, 1]} : vector<1x8x48xf32> to vector<1x8x16xf32>
    %10 = arith.truncf %9 : vector<1x8x16xf32> to vector<1x8x16xbf16>
    "tpu.trace_start"() <{level = 10 : i32, message = "btd,bsd->bts"}> : () -> ()
    %cst_3 = arith.constant dense<0.000000e+00> : vector<1x8x8xf32>
    %11 = tpu.matmul %6, %8, %cst_3 {dimension_numbers = #tpu.dot_dimension_numbers<[2], [2], [1], [1], [0, 0, 0, 1, 1, 1], [0], [0]>} : vector<1x8x16xbf16>, vector<1x8x16xbf16>, vector<1x8x8xf32> -> vector<1x8x8xf32>
    "tpu.trace_stop"() : () -> ()
    %c0_4 = arith.constant 0 : index
    %c0_5 = arith.constant 0 : index
    %12 = vector.load %arg3[%c0_4, %c0_5] : memref<8x8xbf16, #tpu.memory_space<vmem>>, vector<8x8xbf16>
    %13 = vector.shape_cast %12 : vector<8x8xbf16> to vector<1x8x8xbf16>
    %14 = arith.extf %13 : vector<1x8x8xbf16> to vector<1x8x8xf32>
    %15 = arith.addf %11, %14 : vector<1x8x8xf32>
    %cst_6 = arith.constant dense<0xFF800000> : vector<1x8xf32>
    %16 = vector.multi_reduction <maximumf>, %15, %cst_6 [2] : vector<1x8x8xf32> to vector<1x8xf32>
    %17 = vector.shape_cast %16 : vector<1x8xf32> to vector<1x8x1xf32>
    %18 = vector.broadcast %17 : vector<1x8x1xf32> to vector<1x8x8xf32>
    %19 = arith.subf %15, %18 : vector<1x8x8xf32>
    %20 = math.exp %19 : vector<1x8x8xf32>
    %cst_7 = arith.constant dense<0.000000e+00> : vector<1x8xf32>
    %21 = vector.multi_reduction <add>, %20, %cst_7 [2] : vector<1x8x8xf32> to vector<1x8xf32>
    %22 = vector.shape_cast %21 : vector<1x8xf32> to vector<1x8x1xf32>
    %23 = tpu.reciprocal %22 {approx = true} : vector<1x8x1xf32> -> vector<1x8x1xf32>
    %24 = vector.broadcast %23 : vector<1x8x1xf32> to vector<1x8x8xf32>
    %25 = arith.mulf %20, %24 : vector<1x8x8xf32>
    %26 = arith.truncf %25 : vector<1x8x8xf32> to vector<1x8x8xbf16>
    "tpu.trace_start"() <{level = 10 : i32, message = "bsh,bts->bht"}> : () -> ()
    %cst_8 = arith.constant dense<0.000000e+00> : vector<1x16x8xf32>
    %27 = tpu.matmul %10, %26, %cst_8 {dimension_numbers = #tpu.dot_dimension_numbers<[1], [2], [2], [1], [0, 0, 0, 2, 1, 1], [0], [0]>} : vector<1x8x16xbf16>, vector<1x8x8xbf16>, vector<1x16x8xf32> -> vector<1x16x8xf32>
    "tpu.trace_stop"() : () -> ()
    %c0_9 = arith.constant 0 : index
    %c0_10 = arith.constant 0 : index
    %c0_11 = arith.constant 0 : index
    %28 = vector.load %arg4[%c0_9, %c0_10, %c0_11] : memref<1x16x8xf32, #tpu.memory_space<vmem>>, vector<1x16x8xf32>
    tpu.vector_store %arg4[%c0_9, %c0_10, %c0_11], %27 {strides = array<i32>} : memref<1x16x8xf32, #tpu.memory_space<vmem>>, vector<1x16x8xf32>,
    return
  }
  func.func @transform_0(%arg0: i32) -> (i32, i32) {
    %c0_i32 = arith.constant 0 : i32
    %c0_i32_0 = arith.constant 0 : i32
    return %arg0, %c0_i32 : i32, i32
  }
  func.func @transform_1(%arg0: i32) -> (i32, i32) {
    %c0_i32 = arith.constant 0 : i32
    %c0_i32_0 = arith.constant 0 : i32
    %c0_i32_1 = arith.constant 0 : i32
    return %c0_i32, %c0_i32_0 : i32, i32
  }
  func.func @transform_2(%arg0: i32) -> (i32, i32) {
    %c0_i32 = arith.constant 0 : i32
    %c0_i32_0 = arith.constant 0 : i32
    %c0_i32_1 = arith.constant 0 : i32
    return %c0_i32, %c0_i32_0 : i32, i32
  }
  func.func @transform_3(%arg0: i32) -> (i32, i32, i32) {
    %c0_i32 = arith.constant 0 : i32
    %c0_i32_0 = arith.constant 0 : i32
    %c0_i32_1 = arith.constant 0 : i32
    return %arg0, %c0_i32, %c0_i32_0 : i32, i32, i32
  }
}

</mosaic_0001>

<llo_original>
// kernel: tpu_custom_call.1
$region0: #{tpu_custom_call.1}
  #allocation0 [shape = 'u32[]', space=smem, size = 0x4, offset = 0x4, fixed_abs, tag = 'smem constant byte address 0x4 - core index']
  #allocation1 [shape = 'u32[144,128]{1,0:T(1,128)}', space=vmem, size = 0x12000, scoped, tag = 'internal scratch']
  %s0 = inlined_call_operand.hbm [shape: f32[16,32], index: 0, kind: input, shape index: {}]
  %s1 = inlined_call_operand.hbm [shape: bf16[32,48], index: 1, kind: input, shape index: {}]
  %s2 = inlined_call_operand.hbm [shape: bf16[8,8], index: 2, kind: input, shape index: {}]
  %s3 = inlined_call_operand.vmem [shape: f32[2,16,8], index: 3, kind: output, shape index: {}]
  %s4 = sld [smem:[#allocation0]]
  $region57: #{tpu_custom_call.1} parent=0
    _
  %s6 = ssub.s32 1, %s4
  %s7 = scalar_select 0, %s6, %s4
  $region1: #{tpu_custom_call.1} parent=0
    #allocation2 [shape = 'u8[8192]{0}', space=vmem, size = 0x2000, scoped, tag = 'input window, operand 0']
    #allocation3 [shape = 's32[2]{0}', space=sflag, size = 0x8, scoped, tag = 'scoped memory for tpu_custom_call.1']
    #allocation4 [shape = 'u8[8192]{0}', space=vmem, size = 0x2000, scoped, tag = 'input window, operand 1, single buffered']
    #allocation5 [shape = 's32[1]{0}', space=sflag, size = 0x4, scoped, tag = 'scoped memory for tpu_custom_call.1']
    #allocation6 [shape = 'u8[2048]{0}', space=vmem, size = 0x800, scoped, tag = 'input window, operand 2, single buffered']
    %8 = vsyncpa [#allocation3], 0
    %s9 = scalar_lea.sflag [#allocation3], 1
    %10 = vsyncpa %s9, 0
    %11 = vsyncpa [#allocation5], 0
    loop: start=0, step=1, limit=4
    $region2: #{tpu_custom_call.1} parent=1 // loop_pre_header
      _
    $region3: #{tpu_custom_call.1} parent=1 // loop_header
      %s13 = sphi 0, %s17
      %p14 = scmp.ge.s32.totalorder %s13, 4
      %s23 = sphi 0, %s25
      %s26 = sphi 0, %s23
      %s27 = sphi 0, %s26
      %s43 = sphi 0, %s27
      %s47 = sphi 0, %s47
      %s49 = sphi 0, %s47
      %s50 = sphi 0, %s49
      %s64 = sphi 0, %s50
      %s68 = sphi 0, %s68
      %s70 = sphi 0, %s68
      %s71 = sphi 0, %s70
      %s85 = sphi 0, %s71
      %s91 = sphi 0, %s93
      %s94 = sphi 0, %s91
      %s95 = sphi 0, %s94
      %s111 = sphi 0, %s95
    $region4: #{tpu_custom_call.1} parent=1 // loop_header_branch
      %16 = sbr.rel (%p14) target = $region8
    $region5: #{tpu_custom_call.1} parent=1 // loop_body
      %s18 = ssub.s32 %s13, 1
      %s19 = ssub.s32 %s13, 2
      %s20 = sadd.s32 %s13, 1
      %s21 = ssub.s32 %s13, %s20
      %p22 = scmp.eq.s32.totalorder %s21, 0
      %s24 = sadd.s32 %s23, 1
      %s25 = scalar_select %p22, %s23, %s24
      %p28 = pneg %p22
      %p29 = scmp.eq.s32.totalorder %s13, 1
      %p30 = por %p28, %p29
      %p31 = scmp.ne.s32.totalorder %s23, %s26
      %p32 = scmp.eq.s32.totalorder %s13, 0
      %p33 = por %p31, %p32
      %p34 = scmp.ne.s32.totalorder %s23, %s26
      %p35 = scmp.eq.s32.totalorder %s18, 1
      %p36 = por %p34, %p35
      %p37 = scmp.ne.s32.totalorder %s26, %s27
      %p38 = scmp.eq.s32.totalorder %s18, 0
      %p39 = por %p37, %p38
      %p40 = scmp.ne.s32.totalorder %s26, %s27
      %p41 = scmp.eq.s32.totalorder %s19, 1
      %p42 = por %p40, %p41
      %p44 = scmp.ne.s32.totalorder %s27, %s43
      %p45 = scmp.eq.s32.totalorder %s19, 0
      %p46 = por %p44, %p45
      %s48 = sadd.s32 %s47, 1
      %p51 = scmp.eq.s32.totalorder %s13, 1
      %p52 = scmp.ne.s32.totalorder %s47, %s49
      %p53 = scmp.eq.s32.totalorder %s13, 0
      %p54 = por %p52, %p53
      %p55 = scmp.ne.s32.totalorder %s47, %s49
      %p56 = scmp.eq.s32.totalorder %s18, 1
      %p57 = por %p55, %p56
      %p58 = scmp.ne.s32.totalorder %s49, %s50
      %p59 = scmp.eq.s32.totalorder %s18, 0
      %p60 = por %p58, %p59
      %p61 = scmp.ne.s32.totalorder %s49, %s50
      %p62 = scmp.eq.s32.totalorder %s19, 1
      %p63 = por %p61, %p62
      %p65 = scmp.ne.s32.totalorder %s50, %s64
      %p66 = scmp.eq.s32.totalorder %s19, 0
      %p67 = por %p65, %p66
      %s69 = sadd.s32 %s68, 1
      %p72 = scmp.eq.s32.totalorder %s13, 1
      %p73 = scmp.ne.s32.totalorder %s68, %s70
      %p74 = scmp.eq.s32.totalorder %s13, 0
      %p75 = por %p73, %p74
      %p76 = scmp.ne.s32.totalorder %s68, %s70
      %p77 = scmp.eq.s32.totalorder %s18, 1
      %p78 = por %p76, %p77
      %p79 = scmp.ne.s32.totalorder %s70, %s71
      %p80 = scmp.eq.s32.totalorder %s18, 0
      %p81 = por %p79, %p80
      %p82 = scmp.ne.s32.totalorder %s70, %s71
      %p83 = scmp.eq.s32.totalorder %s19, 1
      %p84 = por %p82, %p83
      %p86 = scmp.ne.s32.totalorder %s71, %s85
      %p87 = scmp.eq.s32.totalorder %s19, 0
      %p88 = por %p86, %p87
      %s89 = ssub.s32 %s13, %s20
      %p90 = scmp.eq.s32.totalorder %s89, 0
      %s92 = sadd.s32 %s91, 1
      %s93 = scalar_select %p90, %s91, %s92
      %p96 = pneg %p90
      %p97 = scmp.eq.s32.totalorder %s13, 1
      %p98 = por %p96, %p97
      %p99 = scmp.ne.s32.totalorder %s91, %s94
      %p100 = scmp.eq.s32.totalorder %s13, 0
      %p101 = por %p99, %p100
      %p102 = scmp.ne.s32.totalorder %s91, %s94
      %p103 = scmp.eq.s32.totalorder %s18, 1
      %p104 = por %p102, %p103
      %p105 = scmp.ne.s32.totalorder %s94, %s95
      %p106 = scmp.eq.s32.totalorder %s18, 0
      %p107 = por %p105, %p106
      %p108 = scmp.ne.s32.totalorder %s94, %s95
      %p109 = scmp.eq.s32.totalorder %s19, 1
      %p110 = por %p108, %p109
      %p112 = scmp.ne.s32.totalorder %s95, %s111
      %p113 = scmp.eq.s32.totalorder %s19, 0
      %p114 = por %p112, %p113
      %p115 = scmp.le.s32.totalorder 1, %s13
      %p116 = scmp.lt.s32.totalorder %s13, 3
      %p117 = pnand %p115, %p116
      %p118 = pneg %p117
      // Predicated region
      $region9: #{tpu_custom_call.1} parent=5 // pred_check
        _
      $region10: #{tpu_custom_call.1} parent=5 // pred_check_branch
        %120 = sbr.rel (%p117) target = $region12
      $region11: #{tpu_custom_call.1} parent=5 // pred_region
        %s121 = ssub.s32 %s13, 1
        // Predicated region
        $region13: #{tpu_custom_call.1} parent=11 // pred_check
          %p122 = pneg %p60
        $region14: #{tpu_custom_call.1} parent=11 // pred_check_branch
          %124 = sbr.rel (%p122) target = $region16
        $region15: #{tpu_custom_call.1} parent=11 // pred_region
          %s126 = ssub.s32 256, 256
          %127 = vsyncadd [#allocation5], %s126
          %s128 = sshll.u32 [#allocation4], 4
          %s129 = int_to_ptr.vmem [resolvable:$true] %s128
          %134 = dma.hbm_to_vmem [thread:$0]  %s1, 256, %s129, [#allocation5], 64, 64, 4
        $region16: #{tpu_custom_call.1} parent=11 // pred_fallthru
          _
        // Predicated region
        $region17: #{tpu_custom_call.1} parent=11 // pred_check
          %p135 = pneg %p81
        $region18: #{tpu_custom_call.1} parent=11 // pred_check_branch
          %137 = sbr.rel (%p135) target = $region20
        $region19: #{tpu_custom_call.1} parent=11 // pred_region
          %s139 = ssub.s32 64, 64
          %140 = vsyncadd [#allocation5], %s139
          %s142 = sshll.u32 [#allocation6], 4
          %s143 = int_to_ptr.vmem [resolvable:$true] %s142
          %145 = dma.hbm_to_vmem [thread:$0]  %s2, 64, %s143, [#allocation5]
        $region20: #{tpu_custom_call.1} parent=11 // pred_fallthru
          _
      $region12: #{tpu_custom_call.1} parent=5 // pred_fallthru
        _
      %p146 = scmp.lt.s32.totalorder %s13, 2
      // Predicated region
      $region21: #{tpu_custom_call.1} parent=5 // pred_check
        %p147 = pneg %p146
      $region22: #{tpu_custom_call.1} parent=5 // pred_check_branch
        %149 = sbr.rel (%p147) target = $region24
      $region23: #{tpu_custom_call.1} parent=5 // pred_region
        // Predicated region
        $region25: #{tpu_custom_call.1} parent=23 // pred_check
          %p150 = pneg %p33
        $region26: #{tpu_custom_call.1} parent=23 // pred_check_branch
          %152 = sbr.rel (%p150) target = $region28
        $region27: #{tpu_custom_call.1} parent=23 // pred_region
          %s153 = sand.u32 %s23, 1
          %s154 = scalar_lea.sflag [#allocation3], %s153
          %s155 = sand.u32 %s23, 1
          %s156 = smul.addr %s155, 8
          %s157 = scalar_lea.vmem [#allocation2], %s156
          %s159 = ssub.s32 128, 128
          %160 = vsyncadd %s154, %s159
          %s161 = smul.addr %s13, 128
          %s162 = scalar_lea.hbm %s0, %s161
          %s164 = sshll.u32 %s157, 4
          %s165 = int_to_ptr.vmem [resolvable:$true] %s164
          %167 = dma.hbm_to_vmem [thread:$0]  %s162, 128, %s165, %s154
        $region28: #{tpu_custom_call.1} parent=23 // pred_fallthru
          _
      $region24: #{tpu_custom_call.1} parent=5 // pred_fallthru
        _
      %p168 = scmp.le.s32.totalorder 1, %s13
      %p169 = scmp.lt.s32.totalorder %s13, 3
      %p170 = pnand %p168, %p169
      %p171 = pneg %p170
      // Predicated region
      $region29: #{tpu_custom_call.1} parent=5 // pred_check
        _
      $region30: #{tpu_custom_call.1} parent=5 // pred_check_branch
        %173 = sbr.rel (%p170) target = $region32
      $region31: #{tpu_custom_call.1} parent=5 // pred_region
        %s174 = ssub.s32 %s13, 1
        %s175 = sand.u32 %s26, 1
        %s176 = scalar_lea.sflag [#allocation3], %s175
        %s177 = sand.u32 %s26, 1
        %s178 = smul.addr %s177, 8
        %s179 = scalar_lea.vmem [#allocation2], %s178
        // Predicated region
        $region33: #{tpu_custom_call.1} parent=31 // pred_check
          %p180 = pneg %p39
        $region34: #{tpu_custom_call.1} parent=31 // pred_check_branch
          %182 = sbr.rel (%p180) target = $region36
        $region35: #{tpu_custom_call.1} parent=31 // pred_region
          %183 = dma.done %s176, 128
        $region36: #{tpu_custom_call.1} parent=31 // pred_fallthru
          _
        // Predicated region
        $region37: #{tpu_custom_call.1} parent=31 // pred_check
          %p184 = pneg %p60
        $region38: #{tpu_custom_call.1} parent=31 // pred_check_branch
          %186 = sbr.rel (%p184) target = $region40
        $region39: #{tpu_custom_call.1} parent=31 // pred_region
          %187 = dma.done [#allocation5], 256
        $region40: #{tpu_custom_call.1} parent=31 // pred_fallthru
          _
        // Predicated region
        $region41: #{tpu_custom_call.1} parent=31 // pred_check
          %p188 = pneg %p81
        $region42: #{tpu_custom_call.1} parent=31 // pred_check_branch
          %190 = sbr.rel (%p188) target = $region44
        $region43: #{tpu_custom_call.1} parent=31 // pred_region
          %191 = dma.done [#allocation5], 64
        $region44: #{tpu_custom_call.1} parent=31 // pred_fallthru
          _
        %s192 = sand.u32 %s26, 1
        %s193 = scalar_lea.sflag [#allocation3], %s192
        %s194 = sand.u32 %s26, 1
        %s195 = smul.addr %s194, 8
        %s196 = scalar_lea.vmem [#allocation2], %s195
        %p197 = pneg %p39
        %p198 = pneg %p36
        %p199 = pneg %p60
        %p200 = pneg %p57
        %p201 = pneg %p81
        %p202 = pneg %p78
        %p203 = pneg %p107
        %p204 = pneg %p104
        %p205 = scmp.lt.s32.totalorder %s18, 1
        %s206 = scalar_select %p205, %s18, 1
        %s207 = smul.addr %s206, 2
        %s208 = smul.addr %s207, 8
        %s209 = scalar_lea.vmem %s3, %s208
        %p210 = scmp.lt.s32.totalorder %s18, 1
        %s211 = scalar_select %p210, %s18, 1
        %s212 = smul.addr %s211, 2
        %s213 = smul.addr %s212, 8
        %s214 = scalar_lea.vmem %s3, %s213
        %v216 = vld [vmem:[%s179] sm:$0xff]
        %v217 = vpack.c.bf16 %v216, %v216
        %v218 = vld [vmem:[#allocation4] sm:$0xf]
        %v219 = vld [vmem:[#allocation4 + $0x4] sm:$0xf]
        %v220 = vld [vmem:[#allocation4 + $0x8] sm:$0xf]
        %v221 = vld [vmem:[#allocation4 + $0xc] sm:$0xf]
        %v226 = vunpack.c.l.b16 %v218
        %v227 = vunpack.c.l.b16 %v219
        %v228 = vunpack.c.l.b16 %v220
        %v229 = vunpack.c.l.b16 %v221
        %v230 = vpack.c.b16 %v227, %v226
        %v231 = vpack.c.b16 %v229, %v228
        %vm234 = vcmask 261120
        %v236 = vsel %vm234, %v217, 0
        %238 = vmatprep.subr.bf16.mxu0 0
        %239 = vmatpush1.bf16.msra.mxu0 0
        %240 = vmatprep.subr.bf16.mxu0 0
        %241 = vmatpush1.bf16.msra.mxu0 0
        %242 = vmatprep.subr.bf16.mxu0 0
        %243 = vmatpush1.bf16.msra.mxu0 0
        %244 = vmatprep.subr.bf16.mxu0 0
        %245 = vmatpush1.bf16.msra.mxu0 0
        %246 = vmatprep.subr.bf16.mxu0 0
        %247 = vmatpush1.bf16.msra.mxu0 0
        %248 = vmatprep.subr.bf16.mxu0 0
        %249 = vmatpush1.bf16.msra.mxu0 0
        %250 = vmatprep.subr.bf16.mxu0 0
        %251 = vmatpush1.bf16.msra.mxu0 %v231
        %252 = vmatprep.subr.bf16.mxu0 0
        %253 = vmatpush1.bf16.msra.mxu0 %v230
        %254 = vmatprep.subr.bf16.mxu0 0
        %255 = vmatpush2.bf16.msra.mxu0 0
        %256 = vmatprep.subr.bf16.mxu0 0
        %257 = vmatpush2.bf16.msra.mxu0 0
        %258 = vmatprep.subr.bf16.mxu0 0
        %259 = vmatpush2.bf16.msra.mxu0 0
        %260 = vmatprep.subr.bf16.mxu0 0
        %261 = vmatpush2.bf16.msra.mxu0 0
        %262 = vmatprep.subr.bf16.mxu0 0
        %263 = vmatpush2.bf16.msra.mxu0 0
        %264 = vmatprep.subr.bf16.mxu0 0
        %265 = vmatpush2.bf16.msra.mxu0 0
        %266 = vmatprep.subr.bf16.mxu0 0
        %267 = vmatpush2.bf16.msra.mxu0 0
        %268 = vmatprep.subr.bf16.mxu0 0
        %269 = vmatpush2.bf16.msra.mxu0 0
        %270 = vmatprep.mubr.bf16.mxu0 0
        %271 = vmatmul.mubr.bf16.gmra.mxu0 %v236
        %v272 = vpop.f32.mrf.mxu0
        %v273 = vadd.f32 0.0, %v272
        %v274 = vpop.f32.mrf.mxu0
        %v275 = vpop.f32.mrf.mxu0
        %v276 = vpop.f32.mrf.mxu0
        %277 = vdwg.mxu0
        %v278 = vpack.c.bf16 %v273, %v273
        %v279 = vld [vmem:[#allocation6] sm:$0xf]
        %v280 = vunpack.c.l.bf16 %v279
        %282 = vrot.lane.b32.xlu0 %v278, 112
        %v283 = vpop.permute.xlu0 %282
        %vm284 = vcmask 130048
        %v286 = vsel %vm284, %v278, 0
        %v289 = vsel %vm284, %v283, 0
        %291 = vmatprep.subr.bf16.mxu0 0
        %292 = vmatpush1.bf16.xpose.msra.mxu0 0
        %293 = vmatprep.subr.bf16.mxu0 0
        %294 = vmatpush1.bf16.xpose.msra.mxu0 0
        %295 = vmatprep.subr.bf16.mxu0 0
        %296 = vmatpush1.bf16.xpose.msra.mxu0 0
        %297 = vmatprep.subr.bf16.mxu0 0
        %298 = vmatpush1.bf16.xpose.msra.mxu0 0
        %299 = vmatprep.subr.bf16.mxu0 0
        %300 = vmatpush1.bf16.xpose.msra.mxu0 0
        %301 = vmatprep.subr.bf16.mxu0 0
        %302 = vmatpush1.bf16.xpose.msra.mxu0 0
        %303 = vmatprep.subr.bf16.mxu0 0
        %304 = vmatpush1.bf16.xpose.msra.mxu0 0
        %305 = vmatprep.subr.bf16.mxu0 0
        %306 = vmatpush1.bf16.xpose.msra.mxu0 %v289
        %307 = vmatprep.subr.bf16.mxu0 0
        %308 = vmatpush2.bf16.xpose.msra.mxu0 0
        %309 = vmatprep.subr.bf16.mxu0 0
        %310 = vmatpush2.bf16.xpose.msra.mxu0 0
        %311 = vmatprep.subr.bf16.mxu0 0
        %312 = vmatpush2.bf16.xpose.msra.mxu0 0
        %313 = vmatprep.subr.bf16.mxu0 0
        %314 = vmatpush2.bf16.xpose.msra.mxu0 0
        %315 = vmatprep.subr.bf16.mxu0 0
        %316 = vmatpush2.bf16.xpose.msra.mxu0 0
        %317 = vmatprep.subr.bf16.mxu0 0
        %318 = vmatpush2.bf16.xpose.msra.mxu0 0
        %319 = vmatprep.subr.bf16.mxu0 0
        %320 = vmatpush2.bf16.xpose.msra.mxu0 0
        %321 = vmatprep.subr.bf16.mxu0 0
        %322 = vmatpush2.bf16.xpose.msra.mxu0 0
        %323 = vmatprep.mubr.bf16.mxu0 0
        %324 = vmatmul.mubr.bf16.gmra.mxu0 %v286
        %v325 = vpop.f32.mrf.mxu0
        %v326 = vadd.f32 %v280, %v325
        %v327 = vpop.f32.mrf.mxu0
        %v328 = vpop.f32.mrf.mxu0
        %v329 = vpop.f32.mrf.mxu0
        %330 = vdwg.mxu0
        %vm331 = vcmask 64512
        %v332 = vsel %vm331, %v326, -inf
        %333 = vmax.xlane.f32.xlu0 %v332
        %v334 = vpop.xlane.xlu0 %333
        %v335 = vsub.f32 %v326, %v334
        %v336 = vmul.f32 %v335, 1.442695
        %v337 = vpow.pop %v336
        %v338 = vsel %vm331, %v337, 0.0
        %339 = vadd.xlane.f32.xlu0 %v338
        %v340 = vpop.xlane.xlu0 %339
        %v341 = vrcp.pop %v340
        %v342 = vmul.f32 %v337, %v341
        %v343 = vpack.c.bf16 %v342, %v342
        %344 = vrot.lane.b32.xlu0 %v278, 96
        %v345 = vpop.permute.xlu0 %344
        %347 = vxpose.xlu0.c.b16.start [1/8] %v345, 128
        %348 = vxpose.xlu0.c.b16.cont [2/8] 0, 128
        %349 = vxpose.xlu0.c.b16.cont [3/8] 0, 128
        %350 = vxpose.xlu0.c.b16.cont [4/8] 0, 128
        %351 = vxpose.xlu0.c.b16.cont [5/8] 0, 128
        %352 = vxpose.xlu0.c.b16.cont [6/8] 0, 128
        %353 = vxpose.xlu0.c.b16.cont [7/8] 0, 128
        %354 = vxpose.xlu0.c.b16.end [8/8] 0, 128
        %v355 = vpop.trf.xlu0
        %v356 = vpop.trf.xlu0
        %v357 = vpop.trf.xlu0
        %v358 = vpop.trf.xlu0
        %v359 = vpop.trf.xlu0
        %v360 = vpop.trf.xlu0
        %v361 = vpop.trf.xlu0
        %v362 = vpop.trf.xlu0
        %v364 = vsel %vm331, %v355, 0
        %v367 = vsel %vm331, %v343, 0
        %369 = vmatprep.subr.bf16.mxu0 0
        %370 = vmatpush1.bf16.xpose.msra.mxu0 0
        %371 = vmatprep.subr.bf16.mxu0 0
        %372 = vmatpush1.bf16.xpose.msra.mxu0 0
        %373 = vmatprep.subr.bf16.mxu0 0
        %374 = vmatpush1.bf16.xpose.msra.mxu0 0
        %375 = vmatprep.subr.bf16.mxu0 0
        %376 = vmatpush1.bf16.xpose.msra.mxu0 0
        %377 = vmatprep.subr.bf16.mxu0 0
        %378 = vmatpush1.bf16.xpose.msra.mxu0 0
        %379 = vmatprep.subr.bf16.mxu0 0
        %380 = vmatpush1.bf16.xpose.msra.mxu0 0
        %381 = vmatprep.subr.bf16.mxu0 0
        %382 = vmatpush1.bf16.xpose.msra.mxu0 0
        %383 = vmatprep.subr.bf16.mxu0 0
        %384 = vmatpush1.bf16.xpose.msra.mxu0 %v367
        %385 = vmatprep.subr.bf16.mxu0 0
        %386 = vmatpush2.bf16.xpose.msra.mxu0 0
        %387 = vmatprep.subr.bf16.mxu0 0
        %388 = vmatpush2.bf16.xpose.msra.mxu0 0
        %389 = vmatprep.subr.bf16.mxu0 0
        %390 = vmatpush2.bf16.xpose.msra.mxu0 0
        %391 = vmatprep.subr.bf16.mxu0 0
        %392 = vmatpush2.bf16.xpose.msra.mxu0 0
        %393 = vmatprep.subr.bf16.mxu0 0
        %394 = vmatpush2.bf16.xpose.msra.mxu0 0
        %395 = vmatprep.subr.bf16.mxu0 0
        %396 = vmatpush2.bf16.xpose.msra.mxu0 0
        %397 = vmatprep.subr.bf16.mxu0 0
        %398 = vmatpush2.bf16.xpose.msra.mxu0 0
        %399 = vmatprep.subr.bf16.mxu0 0
        %400 = vmatpush2.bf16.xpose.msra.mxu0 0
        %401 = vmatprep.mubr.bf16.mxu0 0
        %402 = vmatmul.mubr.bf16.gmra.mxu0 %v364
        %v403 = vpop.f32.mrf.mxu0
        %v404 = vadd.f32 0.0, %v403
        %v405 = vpop.f32.mrf.mxu0
        %v406 = vpop.f32.mrf.mxu0
        %v407 = vadd.f32 0.0, %v406
        %v408 = vpop.f32.mrf.mxu0
        %409 = vdwg.mxu0
        %410 = vst.msk [vmem:[%s214] sm:$0xff] %vm331, %v404
        %411 = vst.msk [vmem:[%s214 + $0x8] sm:$0xff] %vm331, %v407
        %p412 = scmp.lt.s32.totalorder %s18, 1
        %s413 = scalar_select %p412, %s18, 1
        %s414 = smul.addr %s413, 2
        %s415 = smul.addr %s414, 8
        %s416 = scalar_lea.vmem %s3, %s415
        // Predicated region
        $region45: #{tpu_custom_call.1} parent=31 // pred_check
          %p417 = pneg %p104
        $region46: #{tpu_custom_call.1} parent=31 // pred_check_branch
          %419 = sbr.rel (%p417) target = $region48
        $region47: #{tpu_custom_call.1} parent=31 // pred_region
          _
        $region48: #{tpu_custom_call.1} parent=31 // pred_fallthru
          _
      $region32: #{tpu_custom_call.1} parent=5 // pred_fallthru
        _
      %p420 = scmp.le.s32.totalorder 2, %s13
      // Predicated region
      $region49: #{tpu_custom_call.1} parent=5 // pred_check
        %p421 = pneg %p420
      $region50: #{tpu_custom_call.1} parent=5 // pred_check_branch
        %423 = sbr.rel (%p421) target = $region52
      $region51: #{tpu_custom_call.1} parent=5 // pred_region
        %s424 = ssub.s32 %s13, 2
        // Predicated region
        $region53: #{tpu_custom_call.1} parent=51 // pred_check
          %p425 = pneg %p110
        $region54: #{tpu_custom_call.1} parent=51 // pred_check_branch
          %427 = sbr.rel (%p425) target = $region56
        $region55: #{tpu_custom_call.1} parent=51 // pred_region
          %p428 = scmp.lt.s32.totalorder %s19, 1
          %s429 = scalar_select %p428, %s19, 1
          %s430 = smul.addr %s429, 2
          %s431 = smul.addr %s430, 8
          %s432 = scalar_lea.vmem %s3, %s431
        $region56: #{tpu_custom_call.1} parent=51 // pred_fallthru
          _
      $region52: #{tpu_custom_call.1} parent=5 // pred_fallthru
        _
    $region6: #{tpu_custom_call.1} parent=1 // loop_footer
      %s17 = sadd.s32 1, %s13
    $region7: #{tpu_custom_call.1} parent=1 // loop_footer_branch
      %12 = sbr.rel target = $region3
    $region8: #{tpu_custom_call.1} parent=1 // loop_exit
      _
    %433 = vsyncpa [#allocation3], 1
    %s434 = scalar_lea.sflag [#allocation3], 1
    %435 = vsyncpa %s434, 1
    %436 = vsyncpa [#allocation5], 1

</llo_original>
